<compile_context>
chip_gen: v6e
topology: v6e:2x2x1
jax: 0.10.0
libtpu: 0.0.40
codegen_flags: <defaults>
</compile_context>

<pallas_src>
import functools

import jax
import jax.numpy as jnp
from jax.experimental import pallas as pl
from jax.experimental.pallas import tpu as pltpu


LANE = 128      # last-dim tiling unit (lane width)
SUBLANE = 8     # second-to-last-dim tiling unit (f32 sublanes)


def _round_up(x, m):
    return ((x + m - 1) // m) * m


def _vmem_capacity_bytes():
    try:
        return int(pltpu.get_tpu_info().vmem_capacity_bytes)
    except Exception:
        return 64 << 20   # conservative default (v7x per-TC VMEM)


def _is_v5():
    try:
        return "v5" in jax.devices()[0].device_kind.lower()
    except Exception:
        return False


_VMEM_CAP = _vmem_capacity_bytes()
_SMALL_VMEM = _VMEM_CAP <= (64 << 20)                    # v7x: 64 MiB / TC
_FUSED_VMEM_LIMIT = (40 << 20) if _SMALL_VMEM else (96 << 20)
_TILED_VMEM_LIMIT = (40 << 20) if _SMALL_VMEM else (64 << 20)
_FUSED_VMEM_BUDGET = int(0.75 * _FUSED_VMEM_LIMIT)
_SMALL_MXU = _is_v5()                                    # v5e MXU is 4x128x128


# --------------------------------------------------------------------------
# Fused whole-MLP kernel: weights stay resident in VMEM, activations stay in
# VMEM/vregs, batch tiles stream through a 1-D grid.
# --------------------------------------------------------------------------
def _fused_mlp_kernel(*refs, n_layers, compute_dtype):
    # refs = (x_tile, w0, b0, w1, b1, ..., w_{L-1}, b_{L-1}, out_tile)
    x_ref = refs[0]
    o_ref = refs[1 + 2 * n_layers]
    h = x_ref[...]                      # already compute_dtype (cast in wrapper)
    for i in range(n_layers):
        w = refs[1 + 2 * i][...]        # stored in compute_dtype -> no cast
        b = refs[2 + 2 * i][...]
        acc = jnp.dot(h, w, preferred_element_type=jnp.float32)   # MXU, f32 acc
        acc = acc + b.astype(jnp.float32)                         # VPU, f32
        if i < n_layers - 1:
            h = jnp.maximum(acc, 0.0).astype(compute_dtype)
        else:
            h = acc
    o_ref[...] = h.astype(o_ref.dtype)


# --------------------------------------------------------------------------
# Scalable tiled Linear kernel (fallback when the fused working set is too big)
# --------------------------------------------------------------------------
def _tiled_linear_kernel(x_ref, w_ref, b_ref, o_ref, acc_ref, *, apply_relu):
    @pl.when(pl.program_id(2) == 0)
    def _():
        acc_ref[...] = jnp.zeros_like(acc_ref)

    acc_ref[...] += jnp.dot(x_ref[...], w_ref[...],
                            preferred_element_type=jnp.float32)

    @pl.when(pl.program_id(2) == pl.num_programs(2) - 1)
    def _():
        r = acc_ref[...] + b_ref[...].astype(jnp.float32)
        if apply_relu:
            r = jnp.maximum(r, 0.0)
        o_ref[...] = r.astype(o_ref.dtype)


def pallas_linear_tiled(x, w, b2, apply_relu, out_dtype=None,
                        tm=None, tn=None, tk=None):
    """y = relu?(x @ w + b) with cdiv-style zero padding to tile multiples.

    x:(M,K), w:(K,N), b2:(1,N).  Padded rows/cols are zero so the result is
    unchanged; padding is sliced off before returning."""
    M, K = x.shape
    N = w.shape[1]
    out_dtype = out_dtype or x.dtype

    # Generation-aware preferred tiles: 256 matches the v6e/v7x MXU tile,
    # 128 matches the v5e MXU; bigger K tiles once inputs are 16-bit.
    pref_m = 128 if _SMALL_MXU else 256
    pref_n = 128 if _SMALL_MXU else 256
    pref_k = 1024 if jnp.dtype(x.dtype).itemsize == 2 else 512
    tm = tm or min(pref_m, _round_up(M, SUBLANE))
    tn = tn or min(pref_n, _round_up(N, LANE))
    tk = tk or min(pref_k, _round_up(K, LANE))

    Mp, Kp, Np = _round_up(M, tm), _round_up(K, tk), _round_up(N, tn)
    if (Mp, Kp) != (M, K):
        x = jnp.pad(x, ((0, Mp - M), (0, Kp - K)))
    if (Kp, Np) != (K, N):
        w = jnp.pad(w, ((0, Kp - K), (0, Np - N)))
    if Np != N:
        b2 = jnp.pad(b2, ((0, 0), (0, Np - N)))

    grid = (Mp // tm, Np // tn, Kp // tk)
    cost = pl.CostEstimate(
        flops=2 * Mp * Kp * Np,
        transcendentals=0,
        bytes_accessed=(Mp * Kp * x.dtype.itemsize
                        + Kp * Np * w.dtype.itemsize
                        + Np * b2.dtype.itemsize
                        + Mp * Np * jnp.dtype(out_dtype).itemsize),
    )
    kernel = functools.partial(_tiled_linear_kernel, apply_relu=apply_relu)
    out = pl.pallas_call(
        kernel,
        out_shape=jax.ShapeDtypeStruct((Mp, Np), out_dtype),
        grid_spec=pltpu.PrefetchScalarGridSpec(
            num_scalar_prefetch=0,
            grid=grid,
            in_specs=[
                pl.BlockSpec((tm, tk), lambda i, j, k: (i, k)),
                pl.BlockSpec((tk, tn), lambda i, j, k: (k, j)),
                pl.BlockSpec((1, tn), lambda i, j, k: (0, j)),
            ],
            out_specs=pl.BlockSpec((tm, tn), lambda i, j, k: (i, j)),
            scratch_shapes=[pltpu.VMEM((tm, tn), jnp.float32)],
        ),
        compiler_params=pltpu.CompilerParams(
            dimension_semantics=("parallel", "parallel", "arbitrary"),
            vmem_limit_bytes=_TILED_VMEM_LIMIT,
        ),
        cost_estimate=cost,
    )(x, w, b2)
    if (Mp, Np) != (M, N):
        out = out[:M, :N]
    return out


# --------------------------------------------------------------------------
# Jitted functional forward pass
# --------------------------------------------------------------------------
def _mlp_forward(x, flat_params, *, num_classes, compute_dtype,
                 force_tiled=False):
    """x: (B, In) unpadded f32.  flat_params: (w0, b0, ...) zero-padded to
    lane multiples, stored in compute_dtype.  Returns (B, num_classes) f32."""
    ws = flat_params[0::2]
    bs = flat_params[1::2]
    n_layers = len(ws)
    B, In = x.shape
    In_p = ws[0].shape[0]
    widths_p = [w.shape[1] for w in ws]
    Out_p = widths_p[-1]

    # Batch tile: biggest MXU-friendly tile <= 256; pad batch to a multiple so
    # the fused grid streams activation tiles while weights stay resident.
    tm = min(256, _round_up(B, SUBLANE))
    Bp = _round_up(B, tm)

    # Cast x once here so all kernel DMAs move compute_dtype bytes.
    x_p = jnp.zeros((Bp, In_p), compute_dtype).at[:B, :In].set(
        x.astype(compute_dtype))

    itemsize = jnp.dtype(compute_dtype).itemsize
    param_bytes = sum(w.size * w.dtype.itemsize + b.size * b.dtype.itemsize
                      for w, b in zip(ws, bs))
    # Fused-path VMEM estimate: 2x every pallas-managed buffer (default
    # double-buffering) plus live f32 intermediate activations.
    fused_vmem_est = (
        2 * tm * In_p * itemsize            # x tile
        + 2 * tm * Out_p * 4                # out tile (f32)
        + 2 * param_bytes                   # weights + biases
        + 2 * tm * max(widths_p) * 4        # live f32 intermediates
    )

    if (not force_tiled) and fused_vmem_est <= _FUSED_VMEM_BUDGET:
        # Whole MLP in one kernel, grid over batch tiles.
        kernel = functools.partial(
            _fused_mlp_kernel, n_layers=n_layers, compute_dtype=compute_dtype)
        in_specs = [pl.BlockSpec((tm, In_p), lambda i: (i, 0))]
        for w, b in zip(ws, bs):
            # Constant index_map: DMA'd once, stays resident across the grid.
            in_specs.append(pl.BlockSpec(w.shape, lambda i: (0, 0)))
            in_specs.append(pl.BlockSpec(b.shape, lambda i: (0, 0)))
        cost = pl.CostEstimate(
            flops=sum(2 * Bp * w.shape[0] * w.shape[1] for w in ws),
            transcendentals=0,
            bytes_accessed=Bp * In_p * itemsize + param_bytes + Bp * Out_p * 4,
        )
        out_p = pl.pallas_call(
            kernel,
            out_shape=jax.ShapeDtypeStruct((Bp, Out_p), jnp.float32),
            grid_spec=pltpu.PrefetchScalarGridSpec(
                num_scalar_prefetch=0,
                grid=(Bp // tm,),
                in_specs=in_specs,
                out_specs=pl.BlockSpec((tm, Out_p), lambda i: (i, 0)),
            ),
            compiler_params=pltpu.CompilerParams(
                # batch tiles shard across v7x's 2 TensorCores; no-op on v5e/v6e
                dimension_semantics=("parallel",),
                vmem_limit_bytes=_FUSED_VMEM_LIMIT,
            ),
            cost_estimate=cost,
        )(x_p, *flat_params)
    else:
        # Per-layer tiled matmuls with K-accumulation.  Hidden activations are
        # written in compute_dtype (bf16 halves inter-layer HBM traffic);
        # only the final layer output is f32.
        h = x_p
        for i, (w, b) in enumerate(zip(ws, bs)):
            last = (i == n_layers - 1)
            h = pallas_linear_tiled(
                h, w, b, apply_relu=not last,
                out_dtype=jnp.float32 if last else compute_dtype)
        out_p = h

    return out_p[:B, :num_classes]


class MLP:
    """JAX/Pallas port of the PyTorch MLP (Linear+ReLU ... Linear).

    Weights are stored pre-transposed as (in, out), zero-padded to lane
    multiples (lane-dense, unmasked stores), and kept in compute_dtype so the
    HBM->VMEM weight DMA moves exactly the bytes the MXU consumes."""

    def __init__(self, input_size, hidden_layers, num_classes, key,
                 compute_dtype=jnp.float32, force_tiled=False):
        self.input_size = input_size
        self.num_classes = num_classes
        store_dtype = jnp.dtype(compute_dtype)
        self.params = []         # unpadded f32 (w:(in,out), b:(out,)) reference
        self.padded_params = []  # zero-padded, compute_dtype
        sizes = list(hidden_layers) + [num_classes]
        prev, prev_p = input_size, _round_up(input_size, LANE)
        for size in sizes:
            key, kw, kb = jax.random.split(key, 3)
            # PyTorch nn.Linear default init: U(-1/sqrt(fan_in), 1/sqrt(fan_in)).
            bound = 1.0 / float(prev) ** 0.5
            w = jax.random.uniform(kw, (prev, size), jnp.float32, -bound, bound)
            b = jax.random.uniform(kb, (size,), jnp.float32, -bound, bound)
            self.params.append((w, b))
            size_p = _round_up(size, LANE)
            w_p = jnp.zeros((prev_p, size_p), store_dtype).at[:prev, :size].set(
                w.astype(store_dtype))
            b_p = jnp.zeros((1, size_p), store_dtype).at[0, :size].set(
                b.astype(store_dtype))
            self.padded_params.append((w_p, b_p))
            prev, prev_p = size, size_p

        self._flat_params = tuple(p for wb in self.padded_params for p in wb)
        self._apply = jax.jit(functools.partial(
            _mlp_forward, num_classes=num_classes, compute_dtype=store_dtype,
            force_tiled=force_tiled))

    def __call__(self, x):
        return self._apply(x, self._flat_params)


if __name__ == "__main__":
    key = jax.random.PRNGKey(0)
    k_model, k_x, k_lin = jax.random.split(key, 3)

    batch = 8
    input_size = 256
    hidden_layers = [128, 64]
    num_classes = 10

    model = MLP(input_size, hidden_layers, num_classes, k_model)
    x = jax.random.normal(k_x, (batch, input_size), jnp.float32)
    y = jax.block_until_ready(model(x))

    # Plain-JAX f32 reference of the same forward pass (unpadded params).
    ref = x
    for i, (w, b) in enumerate(model.params):
        ref = ref @ w + b
        if i < len(model.params) - 1:
            ref = jnp.maximum(ref, 0.0)
    assert y.shape == (batch, num_classes)
    assert jnp.allclose(y, ref, atol=1e-4, rtol=1e-4)

    # bf16 mode: weights stored + DMA'd as bf16 (half the weight bytes),
    # f32 accumulation; looser tolerance.
    model_bf16 = MLP(input_size, hidden_layers, num_classes, k_model,
                     compute_dtype=jnp.bfloat16)
    y16 = jax.block_until_ready(model_bf16(x))
    assert y16.shape == (batch, num_classes)
    assert jnp.allclose(y16, ref, atol=1e-1, rtol=1e-1)

    # Forced per-layer tiled fallback (bf16 hidden activations between layers).
    model_tiled = MLP(input_size, hidden_layers, num_classes, k_model,
                      compute_dtype=jnp.bfloat16, force_tiled=True)
    yt16 = jax.block_until_ready(model_tiled(x))
    assert yt16.shape == (batch, num_classes)
    assert jnp.allclose(yt16, ref, atol=1e-1, rtol=1e-1)

    # Tiled Linear kernel self-test with awkward dims: exercises cdiv padding
    # on every axis and the multi-step K accumulator grid.
    k1, k2, k3 = jax.random.split(k_lin, 3)
    Mt, Kt, Nt = 192, 640, 384
    xt = jax.random.normal(k1, (Mt, Kt), jnp.float32)
    wt = jax.random.normal(k2, (Kt, Nt), jnp.float32) * 0.05
    bt = jax.random.normal(k3, (1, Nt), jnp.float32)
    yt = jax.block_until_ready(
        pallas_linear_tiled(xt, wt, bt, apply_relu=True, tk=256))
    reft = jnp.maximum(xt @ wt + bt, 0.0)
    assert yt.shape == (Mt, Nt)
    assert jnp.allclose(yt, reft, atol=2e-3, rtol=2e-3)

    print("KERNEL_OK")
</pallas_src>

<mosaic_0001>
module attributes {stable_mosaic.version = 11 : i64} {
  func.func @_fused_mlp_kernel(%arg0: i32, %arg1: memref<8x256xf32, #tpu.memory_space<vmem>>, %arg2: memref<256x128xf32, #tpu.memory_space<vmem>>, %arg3: memref<1x128xf32, #tpu.memory_space<vmem>>, %arg4: memref<128x128xf32, #tpu.memory_space<vmem>>, %arg5: memref<1x128xf32, #tpu.memory_space<vmem>>, %arg6: memref<128x128xf32, #tpu.memory_space<vmem>>, %arg7: memref<1x128xf32, #tpu.memory_space<vmem>>, %arg8: memref<8x128xf32, #tpu.memory_space<vmem>>) attributes {dimension_semantics = [#tpu.dimension_semantics<parallel>], iteration_bounds = array<i64: 1>, scalar_prefetch = 0 : i64, scratch_operands = 0 : i64, tpu.core_type = #tpu.core_type<tc>, window_params = [{transform_indices = @transform_0, window_bounds = array<i64: 8, 256>}, {pipeline_mode = #tpu.pipeline_mode<synchronous>, transform_indices = @transform_1, window_bounds = array<i64: 256, 128>}, {pipeline_mode = #tpu.pipeline_mode<synchronous>, transform_indices = @transform_2, window_bounds = array<i64: 1, 128>}, {pipeline_mode = #tpu.pipeline_mode<synchronous>, transform_indices = @transform_3, window_bounds = array<i64: 128, 128>}, {pipeline_mode = #tpu.pipeline_mode<synchronous>, transform_indices = @transform_4, window_bounds = array<i64: 1, 128>}, {pipeline_mode = #tpu.pipeline_mode<synchronous>, transform_indices = @transform_5, window_bounds = array<i64: 128, 128>}, {pipeline_mode = #tpu.pipeline_mode<synchronous>, transform_indices = @transform_6, window_bounds = array<i64: 1, 128>}, {transform_indices = @transform_7, window_bounds = array<i64: 8, 128>}]} {
    %c0 = arith.constant 0 : index
    %c0_0 = arith.constant 0 : index
    %0 = vector.load %arg1[%c0, %c0_0] : memref<8x256xf32, #tpu.memory_space<vmem>>, vector<8x256xf32>
    %c0_1 = arith.constant 0 : index
    %c0_2 = arith.constant 0 : index
    %1 = vector.load %arg2[%c0_1, %c0_2] : memref<256x128xf32, #tpu.memory_space<vmem>>, vector<256x128xf32>
    %c0_3 = arith.constant 0 : index
    %c0_4 = arith.constant 0 : index
    %2 = vector.load %arg3[%c0_3, %c0_4] : memref<1x128xf32, #tpu.memory_space<vmem>>, vector<1x128xf32>
    %cst = arith.constant dense<0.000000e+00> : vector<8x128xf32>
    %3 = tpu.matmul %0, %1, %cst {dimension_numbers = #tpu.dot_dimension_numbers<[1], [0], [0], [1], [0, 0, 1, 1], [], []>} : vector<8x256xf32>, vector<256x128xf32>, vector<8x128xf32> -> vector<8x128xf32>
    %4 = vector.broadcast %2 : vector<1x128xf32> to vector<8x128xf32>
    %5 = arith.addf %3, %4 : vector<8x128xf32>
    %cst_5 = arith.constant 0.000000e+00 : f32
    %6 = vector.broadcast %cst_5 : f32 to vector<8x128xf32>
    %7 = arith.maximumf %5, %6 : vector<8x128xf32>
    %c0_6 = arith.constant 0 : index
    %c0_7 = arith.constant 0 : index
    %8 = vector.load %arg4[%c0_6, %c0_7] : memref<128x128xf32, #tpu.memory_space<vmem>>, vector<128x128xf32>
    %c0_8 = arith.constant 0 : index
    %c0_9 = arith.constant 0 : index
    %9 = vector.load %arg5[%c0_8, %c0_9] : memref<1x128xf32, #tpu.memory_space<vmem>>, vector<1x128xf32>
    %cst_10 = arith.constant dense<0.000000e+00> : vector<8x128xf32>
    %10 = tpu.matmul %7, %8, %cst_10 {dimension_numbers = #tpu.dot_dimension_numbers<[1], [0], [0], [1], [0, 0, 1, 1], [], []>} : vector<8x128xf32>, vector<128x128xf32>, vector<8x128xf32> -> vector<8x128xf32>
    %11 = vector.broadcast %9 : vector<1x128xf32> to vector<8x128xf32>
    %12 = arith.addf %10, %11 : vector<8x128xf32>
    %cst_11 = arith.constant 0.000000e+00 : f32
    %13 = vector.broadcast %cst_11 : f32 to vector<8x128xf32>
    %14 = arith.maximumf %12, %13 : vector<8x128xf32>
    %c0_12 = arith.constant 0 : index
    %c0_13 = arith.constant 0 : index
    %15 = vector.load %arg6[%c0_12, %c0_13] : memref<128x128xf32, #tpu.memory_space<vmem>>, vector<128x128xf32>
    %c0_14 = arith.constant 0 : index
    %c0_15 = arith.constant 0 : index
    %16 = vector.load %arg7[%c0_14, %c0_15] : memref<1x128xf32, #tpu.memory_space<vmem>>, vector<1x128xf32>
    %cst_16 = arith.constant dense<0.000000e+00> : vector<8x128xf32>
    %17 = tpu.matmul %14, %15, %cst_16 {dimension_numbers = #tpu.dot_dimension_numbers<[1], [0], [0], [1], [0, 0, 1, 1], [], []>} : vector<8x128xf32>, vector<128x128xf32>, vector<8x128xf32> -> vector<8x128xf32>
    %18 = vector.broadcast %16 : vector<1x128xf32> to vector<8x128xf32>
    %19 = arith.addf %17, %18 : vector<8x128xf32>
    %c0_17 = arith.constant 0 : index
    %c0_18 = arith.constant 0 : index
    %20 = vector.load %arg8[%c0_17, %c0_18] : memref<8x128xf32, #tpu.memory_space<vmem>>, vector<8x128xf32>
    tpu.vector_store %arg8[%c0_17, %c0_18], %19 {strides = array<i32>} : memref<8x128xf32, #tpu.memory_space<vmem>>, vector<8x128xf32>,
    return
  }
  func.func @transform_0(%arg0: i32) -> (i32, i32) {
    %c0_i32 = arith.constant 0 : i32
    %c0_i32_0 = arith.constant 0 : i32
    return %arg0, %c0_i32 : i32, i32
  }
  func.func @transform_1(%arg0: i32) -> (i32, i32) {
    %c0_i32 = arith.constant 0 : i32
    %c0_i32_0 = arith.constant 0 : i32
    %c0_i32_1 = arith.constant 0 : i32
    return %c0_i32, %c0_i32_0 : i32, i32
  }
  func.func @transform_2(%arg0: i32) -> (i32, i32) {
    %c0_i32 = arith.constant 0 : i32
    %c0_i32_0 = arith.constant 0 : i32
    %c0_i32_1 = arith.constant 0 : i32
    return %c0_i32, %c0_i32_0 : i32, i32
  }
  func.func @transform_3(%arg0: i32) -> (i32, i32) {
    %c0_i32 = arith.constant 0 : i32
    %c0_i32_0 = arith.constant 0 : i32
    %c0_i32_1 = arith.constant 0 : i32
    return %c0_i32, %c0_i32_0 : i32, i32
  }
  func.func @transform_4(%arg0: i32) -> (i32, i32) {
    %c0_i32 = arith.constant 0 : i32
    %c0_i32_0 = arith.constant 0 : i32
    %c0_i32_1 = arith.constant 0 : i32
    return %c0_i32, %c0_i32_0 : i32, i32
  }
  func.func @transform_5(%arg0: i32) -> (i32, i32) {
    %c0_i32 = arith.constant 0 : i32
    %c0_i32_0 = arith.constant 0 : i32
    %c0_i32_1 = arith.constant 0 : i32
    return %c0_i32, %c0_i32_0 : i32, i32
  }
  func.func @transform_6(%arg0: i32) -> (i32, i32) {
    %c0_i32 = arith.constant 0 : i32
    %c0_i32_0 = arith.constant 0 : i32
    %c0_i32_1 = arith.constant 0 : i32
    return %c0_i32, %c0_i32_0 : i32, i32
  }
  func.func @transform_7(%arg0: i32) -> (i32, i32) {
    %c0_i32 = arith.constant 0 : i32
    %c0_i32_0 = arith.constant 0 : i32
    return %arg0, %c0_i32 : i32, i32
  }
}

</mosaic_0001>

<llo_original>
// kernel: _mlp_forward.1
$region0: #{_mlp_forward.1}
  #allocation0 [shape = 'u32[]', space=smem, size = 0x4, offset = 0x4, fixed_abs, tag = 'smem constant byte address 0x4 - core index']
  #allocation1 [shape = 'u32[144,128]{1,0:T(1,128)}', space=vmem, size = 0x12000, scoped, tag = 'internal scratch']
  %s0 = inlined_call_operand.hbm [shape: f32[8,256], index: 0, kind: input, shape index: {}]
  %s1 = inlined_call_operand.hbm [shape: f32[256,128], index: 1, kind: input, shape index: {}]
  %s2 = inlined_call_operand.vmem [shape: f32[1,128], index: 2, kind: input, shape index: {}]
  %s3 = inlined_call_operand.hbm [shape: f32[128,128], index: 3, kind: input, shape index: {}]
  %s4 = inlined_call_operand.vmem [shape: f32[1,128], index: 4, kind: input, shape index: {}]
  %s5 = inlined_call_operand.hbm [shape: f32[128,128], index: 5, kind: input, shape index: {}]
  %s6 = inlined_call_operand.vmem [shape: f32[1,128], index: 6, kind: input, shape index: {}]
  %s7 = inlined_call_operand.hbm [shape: f32[8,128], index: 7, kind: output, shape index: {}]
  %s8 = sld [smem:[#allocation0]]
  $region54: #{_mlp_forward.1} parent=0
    _
  %s10 = ssub.s32 1, %s8
  %s11 = scalar_select 0, %s10, %s8
  $region1: #{_mlp_forward.1} parent=0
    #allocation2 [shape = 'u8[8192]{0}', space=vmem, size = 0x2000, scoped, tag = 'input window, operand 0, single buffered']
    #allocation3 [shape = 's32[1]{0}', space=sflag, size = 0x4, scoped, tag = 'scoped memory for _mlp_forward.1']
    #allocation4 [shape = 's32[1]{0}', space=sflag, size = 0x4, scoped, tag = 'scoped memory for _mlp_forward.1']
    #allocation5 [shape = 'u8[131072]{0}', space=vmem, size = 0x20000, scoped, tag = 'input window, operand 1, single buffered']
    #allocation6 [shape = 's32[1]{0}', space=sflag, size = 0x4, scoped, tag = 'scoped memory for _mlp_forward.1']
    #allocation7 [shape = 'u8[65536]{0}', space=vmem, size = 0x10000, scoped, tag = 'input window, operand 3, single buffered']
    #allocation8 [shape = 'u8[65536]{0}', space=vmem, size = 0x10000, scoped, tag = 'input window, operand 5, single buffered']
    #allocation9 [shape = 's32[1]{0}', space=sflag, size = 0x4, scoped, tag = 'scoped memory for _mlp_forward.1']
    #allocation10 [shape = 'u8[4096]{0}', space=vmem, size = 0x1000, scoped, tag = 'output window, operand 0, single buffered']
    %12 = vsyncpa [#allocation3], 0
    %13 = vsyncpa [#allocation6], 0
    %14 = vsyncpa [#allocation9], 0
    %15 = vsyncpa [#allocation4], 0
    // Predicated region
    $region2: #{_mlp_forward.1} parent=1 // pred_check
      _
    $region3: #{_mlp_forward.1} parent=1 // pred_check_branch
      %17 = sbr.rel (0) target = $region5
    $region4: #{_mlp_forward.1} parent=1 // pred_region
      %s19 = ssub.s32 256, 256
      %20 = vsyncadd [#allocation3], %s19
      %s22 = sshll.u32 [#allocation2], 4
      %s23 = int_to_ptr.vmem [resolvable:$true] %s22
      %25 = dma.hbm_to_vmem [thread:$0]  %s0, 256, %s23, [#allocation3]
    $region5: #{_mlp_forward.1} parent=1 // pred_fallthru
      _
    // Predicated region
    $region6: #{_mlp_forward.1} parent=1 // pred_check
      _
    $region7: #{_mlp_forward.1} parent=1 // pred_check_branch
      %27 = sbr.rel (0) target = $region9
    $region8: #{_mlp_forward.1} parent=1 // pred_region
      %s29 = ssub.s32 4096, 4096
      %30 = vsyncadd [#allocation6], %s29
      %s31 = sshll.u32 [#allocation5], 4
      %s32 = int_to_ptr.vmem [resolvable:$true] %s31
      %37 = dma.hbm_to_vmem [thread:$0]  %s1, 4096, %s32, [#allocation6], 128, 128, 8
    $region9: #{_mlp_forward.1} parent=1 // pred_fallthru
      _
    // Predicated region
    $region10: #{_mlp_forward.1} parent=1 // pred_check
      _
    $region11: #{_mlp_forward.1} parent=1 // pred_check_branch
      %39 = sbr.rel (0) target = $region13
    $region12: #{_mlp_forward.1} parent=1 // pred_region
      _
    $region13: #{_mlp_forward.1} parent=1 // pred_fallthru
      _
    // Predicated region
    $region14: #{_mlp_forward.1} parent=1 // pred_check
      _
    $region15: #{_mlp_forward.1} parent=1 // pred_check_branch
      %41 = sbr.rel (0) target = $region17
    $region16: #{_mlp_forward.1} parent=1 // pred_region
      %s43 = ssub.s32 2048, 2048
      %44 = vsyncadd [#allocation6], %s43
      %s45 = sshll.u32 [#allocation7], 4
      %s46 = int_to_ptr.vmem [resolvable:$true] %s45
      %51 = dma.hbm_to_vmem [thread:$0]  %s3, 2048, %s46, [#allocation6], 128, 128, 8
    $region17: #{_mlp_forward.1} parent=1 // pred_fallthru
      _
    // Predicated region
    $region18: #{_mlp_forward.1} parent=1 // pred_check
      _
    $region19: #{_mlp_forward.1} parent=1 // pred_check_branch
      %53 = sbr.rel (0) target = $region21
    $region20: #{_mlp_forward.1} parent=1 // pred_region
      _
    $region21: #{_mlp_forward.1} parent=1 // pred_fallthru
      _
    // Predicated region
    $region22: #{_mlp_forward.1} parent=1 // pred_check
      _
    $region23: #{_mlp_forward.1} parent=1 // pred_check_branch
      %55 = sbr.rel (0) target = $region25
    $region24: #{_mlp_forward.1} parent=1 // pred_region
      %s57 = ssub.s32 2048, 2048
      %58 = vsyncadd [#allocation9], %s57
      %s59 = sshll.u32 [#allocation8], 4
      %s60 = int_to_ptr.vmem [resolvable:$true] %s59
      %65 = dma.hbm_to_vmem [thread:$0]  %s5, 2048, %s60, [#allocation9], 128, 128, 8
    $region25: #{_mlp_forward.1} parent=1 // pred_fallthru
      _
    // Predicated region
    $region26: #{_mlp_forward.1} parent=1 // pred_check
      _
    $region27: #{_mlp_forward.1} parent=1 // pred_check_branch
      %67 = sbr.rel (0) target = $region29
    $region28: #{_mlp_forward.1} parent=1 // pred_region
      _
    $region29: #{_mlp_forward.1} parent=1 // pred_fallthru
      _
    // Predicated region
    $region30: #{_mlp_forward.1} parent=1 // pred_check
      _
    $region31: #{_mlp_forward.1} parent=1 // pred_check_branch
      %69 = sbr.rel (0) target = $region33
    $region32: #{_mlp_forward.1} parent=1 // pred_region
      %70 = dma.done [#allocation3], 256
    $region33: #{_mlp_forward.1} parent=1 // pred_fallthru
      _
    // Predicated region
    $region34: #{_mlp_forward.1} parent=1 // pred_check
      _
    $region35: #{_mlp_forward.1} parent=1 // pred_check_branch
      %72 = sbr.rel (0) target = $region37
    $region36: #{_mlp_forward.1} parent=1 // pred_region
      %73 = dma.done [#allocation6], 4096
    $region37: #{_mlp_forward.1} parent=1 // pred_fallthru
      _
    // Predicated region
    $region38: #{_mlp_forward.1} parent=1 // pred_check
      _
    $region39: #{_mlp_forward.1} parent=1 // pred_check_branch
      %75 = sbr.rel (0) target = $region41
    $region40: #{_mlp_forward.1} parent=1 // pred_region
      %76 = dma.done [#allocation6], 2048
    $region41: #{_mlp_forward.1} parent=1 // pred_fallthru
      _
    // Predicated region
    $region42: #{_mlp_forward.1} parent=1 // pred_check
      _
    $region43: #{_mlp_forward.1} parent=1 // pred_check_branch
      %78 = sbr.rel (0) target = $region45
    $region44: #{_mlp_forward.1} parent=1 // pred_region
      %79 = dma.done [#allocation9], 2048
    $region45: #{_mlp_forward.1} parent=1 // pred_fallthru
      _
    %v80 = vld [vmem:[#allocation2] sm:$0xff]
    %v81 = vld [vmem:[#allocation2 + $0x8] sm:$0xff]
    %v82 = vld [vmem:[#allocation5] sm:$0xff]
    %v83 = vld [vmem:[#allocation5 + $0x8] sm:$0xff]
    %v84 = vld [vmem:[#allocation5 + $0x10] sm:$0xff]
    %v85 = vld [vmem:[#allocation5 + $0x18] sm:$0xff]
    %v86 = vld [vmem:[#allocation5 + $0x20] sm:$0xff]
    %v87 = vld [vmem:[#allocation5 + $0x28] sm:$0xff]
    %v88 = vld [vmem:[#allocation5 + $0x30] sm:$0xff]
    %v89 = vld [vmem:[#allocation5 + $0x38] sm:$0xff]
    %v90 = vld [vmem:[#allocation5 + $0x40] sm:$0xff]
    %v91 = vld [vmem:[#allocation5 + $0x48] sm:$0xff]
    %v92 = vld [vmem:[#allocation5 + $0x50] sm:$0xff]
    %v93 = vld [vmem:[#allocation5 + $0x58] sm:$0xff]
    %v94 = vld [vmem:[#allocation5 + $0x60] sm:$0xff]
    %v95 = vld [vmem:[#allocation5 + $0x68] sm:$0xff]
    %v96 = vld [vmem:[#allocation5 + $0x70] sm:$0xff]
    %v97 = vld [vmem:[#allocation5 + $0x78] sm:$0xff]
    %v98 = vld [vmem:[#allocation5 + $0x80] sm:$0xff]
    %v99 = vld [vmem:[#allocation5 + $0x88] sm:$0xff]
    %v100 = vld [vmem:[#allocation5 + $0x90] sm:$0xff]
    %v101 = vld [vmem:[#allocation5 + $0x98] sm:$0xff]
    %v102 = vld [vmem:[#allocation5 + $0xa0] sm:$0xff]
    %v103 = vld [vmem:[#allocation5 + $0xa8] sm:$0xff]
    %v104 = vld [vmem:[#allocation5 + $0xb0] sm:$0xff]
    %v105 = vld [vmem:[#allocation5 + $0xb8] sm:$0xff]
    %v106 = vld [vmem:[#allocation5 + $0xc0] sm:$0xff]
    %v107 = vld [vmem:[#allocation5 + $0xc8] sm:$0xff]
    %v108 = vld [vmem:[#allocation5 + $0xd0] sm:$0xff]
    %v109 = vld [vmem:[#allocation5 + $0xd8] sm:$0xff]
    %v110 = vld [vmem:[#allocation5 + $0xe0] sm:$0xff]
    %v111 = vld [vmem:[#allocation5 + $0xe8] sm:$0xff]
    %v112 = vld [vmem:[#allocation5 + $0xf0] sm:$0xff]
    %v113 = vld [vmem:[#allocation5 + $0xf8] sm:$0xff]
    %v114 = vld [vmem:[%s2] sm:$0x1]
    %v116 = vlaneseq
    %v117 = vshrl.u32 %v116, 7
    %v118 = vsub.s32 0, %v117
    %v119 = vrot.slane %v114, %v118
    %121 = vmatprep.subr.mxu0 0.0
    %122 = vmatpush1.msra.mxu0 %v97
    %123 = vmatprep.subr.mxu0 0.0
    %124 = vmatpush1.msra.mxu0 %v96
    %125 = vmatprep.subr.mxu0 0.0
    %126 = vmatpush1.msra.mxu0 %v95
    %127 = vmatprep.subr.mxu0 0.0
    %128 = vmatpush1.msra.mxu0 %v94
    %129 = vmatprep.subr.mxu0 0.0
    %130 = vmatpush1.msra.mxu0 %v93
    %131 = vmatprep.subr.mxu0 0.0
    %132 = vmatpush1.msra.mxu0 %v92
    %133 = vmatprep.subr.mxu0 0.0
    %134 = vmatpush1.msra.mxu0 %v91
    %135 = vmatprep.subr.mxu0 0.0
    %136 = vmatpush1.msra.mxu0 %v90
    %137 = vmatprep.subr.mxu0 0.0
    %138 = vmatpush1.msra.mxu0 %v89
    %139 = vmatprep.subr.mxu0 0.0
    %140 = vmatpush1.msra.mxu0 %v88
    %141 = vmatprep.subr.mxu0 0.0
    %142 = vmatpush1.msra.mxu0 %v87
    %143 = vmatprep.subr.mxu0 0.0
    %144 = vmatpush1.msra.mxu0 %v86
    %145 = vmatprep.subr.mxu0 0.0
    %146 = vmatpush1.msra.mxu0 %v85
    %147 = vmatprep.subr.mxu0 0.0
    %148 = vmatpush1.msra.mxu0 %v84
    %149 = vmatprep.subr.mxu0 0.0
    %150 = vmatpush1.msra.mxu0 %v83
    %151 = vmatprep.subr.mxu0 0.0
    %152 = vmatpush1.msra.mxu0 %v82
    %153 = vmatprep.subr.mxu0 0.0
    %154 = vmatpush2.msra.mxu0 %v113
    %155 = vmatprep.subr.mxu0 0.0
    %156 = vmatpush2.msra.mxu0 %v112
    %157 = vmatprep.subr.mxu0 0.0
    %158 = vmatpush2.msra.mxu0 %v111
    %159 = vmatprep.subr.mxu0 0.0
    %160 = vmatpush2.msra.mxu0 %v110
    %161 = vmatprep.subr.mxu0 0.0
    %162 = vmatpush2.msra.mxu0 %v109
    %163 = vmatprep.subr.mxu0 0.0
    %164 = vmatpush2.msra.mxu0 %v108
    %165 = vmatprep.subr.mxu0 0.0
    %166 = vmatpush2.msra.mxu0 %v107
    %167 = vmatprep.subr.mxu0 0.0
    %168 = vmatpush2.msra.mxu0 %v106
    %169 = vmatprep.subr.mxu0 0.0
    %170 = vmatpush2.msra.mxu0 %v105
    %171 = vmatprep.subr.mxu0 0.0
    %172 = vmatpush2.msra.mxu0 %v104
    %173 = vmatprep.subr.mxu0 0.0
    %174 = vmatpush2.msra.mxu0 %v103
    %175 = vmatprep.subr.mxu0 0.0
    %176 = vmatpush2.msra.mxu0 %v102
    %177 = vmatprep.subr.mxu0 0.0
    %178 = vmatpush2.msra.mxu0 %v101
    %179 = vmatprep.subr.mxu0 0.0
    %180 = vmatpush2.msra.mxu0 %v100
    %181 = vmatprep.subr.mxu0 0.0
    %182 = vmatpush2.msra.mxu0 %v99
    %183 = vmatprep.subr.mxu0 0.0
    %184 = vmatpush2.msra.mxu0 %v98
    %185 = vmatprep.mubr.f32.mxu0 %v81
    %186 = vmatmul.mubr.f32.gmra.mxu0 %v80
    %v187 = vpop.f32.mrf.mxu0
    %v188 = vadd.f32 %v119, %v187
    %v189 = vpop.f32.mrf.mxu0
    %190 = vdwg.mxu0
    %v191 = vmax.f32 %v188, 0.0
    %v192 = vld [vmem:[#allocation7] sm:$0xff]
    %v193 = vld [vmem:[#allocation7 + $0x8] sm:$0xff]
    %v194 = vld [vmem:[#allocation7 + $0x10] sm:$0xff]
    %v195 = vld [vmem:[#allocation7 + $0x18] sm:$0xff]
    %v196 = vld [vmem:[#allocation7 + $0x20] sm:$0xff]
    %v197 = vld [vmem:[#allocation7 + $0x28] sm:$0xff]
    %v198 = vld [vmem:[#allocation7 + $0x30] sm:$0xff]
    %v199 = vld [vmem:[#allocation7 + $0x38] sm:$0xff]
    %v200 = vld [vmem:[#allocation7 + $0x40] sm:$0xff]
    %v201 = vld [vmem:[#allocation7 + $0x48] sm:$0xff]
    %v202 = vld [vmem:[#allocation7 + $0x50] sm:$0xff]
    %v203 = vld [vmem:[#allocation7 + $0x58] sm:$0xff]
    %v204 = vld [vmem:[#allocation7 + $0x60] sm:$0xff]
    %v205 = vld [vmem:[#allocation7 + $0x68] sm:$0xff]
    %v206 = vld [vmem:[#allocation7 + $0x70] sm:$0xff]
    %v207 = vld [vmem:[#allocation7 + $0x78] sm:$0xff]
    %v208 = vld [vmem:[%s4] sm:$0x1]
    %v210 = vlaneseq
    %v211 = vshrl.u32 %v210, 7
    %v212 = vsub.s32 0, %v211
    %v213 = vrot.slane %v208, %v212
    %215 = vmatprep.subr.mxu0 0.0
    %216 = vmatpush1.msra.mxu0 %v207
    %217 = vmatprep.subr.mxu0 0.0
    %218 = vmatpush1.msra.mxu0 %v206
    %219 = vmatprep.subr.mxu0 0.0
    %220 = vmatpush1.msra.mxu0 %v205
    %221 = vmatprep.subr.mxu0 0.0
    %222 = vmatpush1.msra.mxu0 %v204
    %223 = vmatprep.subr.mxu0 0.0
    %224 = vmatpush1.msra.mxu0 %v203
    %225 = vmatprep.subr.mxu0 0.0
    %226 = vmatpush1.msra.mxu0 %v202
    %227 = vmatprep.subr.mxu0 0.0
    %228 = vmatpush1.msra.mxu0 %v201
    %229 = vmatprep.subr.mxu0 0.0
    %230 = vmatpush1.msra.mxu0 %v200
    %231 = vmatprep.subr.mxu0 0.0
    %232 = vmatpush1.msra.mxu0 %v199
    %233 = vmatprep.subr.mxu0 0.0
    %234 = vmatpush1.msra.mxu0 %v198
    %235 = vmatprep.subr.mxu0 0.0
    %236 = vmatpush1.msra.mxu0 %v197
    %237 = vmatprep.subr.mxu0 0.0
    %238 = vmatpush1.msra.mxu0 %v196
    %239 = vmatprep.subr.mxu0 0.0
    %240 = vmatpush1.msra.mxu0 %v195
    %241 = vmatprep.subr.mxu0 0.0
    %242 = vmatpush1.msra.mxu0 %v194
    %243 = vmatprep.subr.mxu0 0.0
    %244 = vmatpush1.msra.mxu0 %v193
    %245 = vmatprep.subr.mxu0 0.0
    %246 = vmatpush1.msra.mxu0 %v192
    %247 = vmatprep.subr.mxu0 0.0
    %248 = vmatpush2.msra.mxu0 0.0
    %249 = vmatprep.subr.mxu0 0.0
    %250 = vmatpush2.msra.mxu0 0.0
    %251 = vmatprep.subr.mxu0 0.0
    %252 = vmatpush2.msra.mxu0 0.0
    %253 = vmatprep.subr.mxu0 0.0
    %254 = vmatpush2.msra.mxu0 0.0
    %255 = vmatprep.subr.mxu0 0.0
    %256 = vmatpush2.msra.mxu0 0.0
    %257 = vmatprep.subr.mxu0 0.0
    %258 = vmatpush2.msra.mxu0 0.0
    %259 = vmatprep.subr.mxu0 0.0
    %260 = vmatpush2.msra.mxu0 0.0
    %261 = vmatprep.subr.mxu0 0.0
    %262 = vmatpush2.msra.mxu0 0.0
    %263 = vmatprep.subr.mxu0 0.0
    %264 = vmatpush2.msra.mxu0 0.0
    %265 = vmatprep.subr.mxu0 0.0
    %266 = vmatpush2.msra.mxu0 0.0
    %267 = vmatprep.subr.mxu0 0.0
    %268 = vmatpush2.msra.mxu0 0.0
    %269 = vmatprep.subr.mxu0 0.0
    %270 = vmatpush2.msra.mxu0 0.0
    %271 = vmatprep.subr.mxu0 0.0
    %272 = vmatpush2.msra.mxu0 0.0
    %273 = vmatprep.subr.mxu0 0.0
    %274 = vmatpush2.msra.mxu0 0.0
    %275 = vmatprep.subr.mxu0 0.0
    %276 = vmatpush2.msra.mxu0 0.0
    %277 = vmatprep.subr.mxu0 0.0
    %278 = vmatpush2.msra.mxu0 0.0
    %279 = vmatprep.mubr.f32.mxu0 0.0
    %280 = vmatmul.mubr.f32.gmra.mxu0 %v191
    %v281 = vpop.f32.mrf.mxu0
    %v282 = vadd.f32 %v213, %v281
    %v283 = vpop.f32.mrf.mxu0
    %284 = vdwg.mxu0
    %v285 = vmax.f32 %v282, 0.0
    %v286 = vld [vmem:[#allocation8] sm:$0xff]
    %v287 = vld [vmem:[#allocation8 + $0x8] sm:$0xff]
    %v288 = vld [vmem:[#allocation8 + $0x10] sm:$0xff]
    %v289 = vld [vmem:[#allocation8 + $0x18] sm:$0xff]
    %v290 = vld [vmem:[#allocation8 + $0x20] sm:$0xff]
    %v291 = vld [vmem:[#allocation8 + $0x28] sm:$0xff]
    %v292 = vld [vmem:[#allocation8 + $0x30] sm:$0xff]
    %v293 = vld [vmem:[#allocation8 + $0x38] sm:$0xff]
    %v294 = vld [vmem:[#allocation8 + $0x40] sm:$0xff]
    %v295 = vld [vmem:[#allocation8 + $0x48] sm:$0xff]
    %v296 = vld [vmem:[#allocation8 + $0x50] sm:$0xff]
    %v297 = vld [vmem:[#allocation8 + $0x58] sm:$0xff]
    %v298 = vld [vmem:[#allocation8 + $0x60] sm:$0xff]
    %v299 = vld [vmem:[#allocation8 + $0x68] sm:$0xff]
    %v300 = vld [vmem:[#allocation8 + $0x70] sm:$0xff]
    %v301 = vld [vmem:[#allocation8 + $0x78] sm:$0xff]
    %v302 = vld [vmem:[%s6] sm:$0x1]
    %v304 = vlaneseq
    %v305 = vshrl.u32 %v304, 7
    %v306 = vsub.s32 0, %v305
    %v307 = vrot.slane %v302, %v306
    %309 = vmatprep.subr.mxu0 0.0
    %310 = vmatpush1.msra.mxu0 %v301
    %311 = vmatprep.subr.mxu0 0.0
    %312 = vmatpush1.msra.mxu0 %v300
    %313 = vmatprep.subr.mxu0 0.0
    %314 = vmatpush1.msra.mxu0 %v299
    %315 = vmatprep.subr.mxu0 0.0
    %316 = vmatpush1.msra.mxu0 %v298
    %317 = vmatprep.subr.mxu0 0.0
    %318 = vmatpush1.msra.mxu0 %v297
    %319 = vmatprep.subr.mxu0 0.0
    %320 = vmatpush1.msra.mxu0 %v296
    %321 = vmatprep.subr.mxu0 0.0
    %322 = vmatpush1.msra.mxu0 %v295
    %323 = vmatprep.subr.mxu0 0.0
    %324 = vmatpush1.msra.mxu0 %v294
    %325 = vmatprep.subr.mxu0 0.0
    %326 = vmatpush1.msra.mxu0 %v293
    %327 = vmatprep.subr.mxu0 0.0
    %328 = vmatpush1.msra.mxu0 %v292
    %329 = vmatprep.subr.mxu0 0.0
    %330 = vmatpush1.msra.mxu0 %v291
    %331 = vmatprep.subr.mxu0 0.0
    %332 = vmatpush1.msra.mxu0 %v290
    %333 = vmatprep.subr.mxu0 0.0
    %334 = vmatpush1.msra.mxu0 %v289
    %335 = vmatprep.subr.mxu0 0.0
    %336 = vmatpush1.msra.mxu0 %v288
    %337 = vmatprep.subr.mxu0 0.0
    %338 = vmatpush1.msra.mxu0 %v287
    %339 = vmatprep.subr.mxu0 0.0
    %340 = vmatpush1.msra.mxu0 %v286
    %341 = vmatprep.subr.mxu0 0.0
    %342 = vmatpush2.msra.mxu0 0.0
    %343 = vmatprep.subr.mxu0 0.0
    %344 = vmatpush2.msra.mxu0 0.0
    %345 = vmatprep.subr.mxu0 0.0
    %346 = vmatpush2.msra.mxu0 0.0
    %347 = vmatprep.subr.mxu0 0.0
    %348 = vmatpush2.msra.mxu0 0.0
    %349 = vmatprep.subr.mxu0 0.0
    %350 = vmatpush2.msra.mxu0 0.0
    %351 = vmatprep.subr.mxu0 0.0
    %352 = vmatpush2.msra.mxu0 0.0
    %353 = vmatprep.subr.mxu0 0.0
    %354 = vmatpush2.msra.mxu0 0.0
    %355 = vmatprep.subr.mxu0 0.0
    %356 = vmatpush2.msra.mxu0 0.0
    %357 = vmatprep.subr.mxu0 0.0
    %358 = vmatpush2.msra.mxu0 0.0
    %359 = vmatprep.subr.mxu0 0.0
    %360 = vmatpush2.msra.mxu0 0.0
    %361 = vmatprep.subr.mxu0 0.0
    %362 = vmatpush2.msra.mxu0 0.0
    %363 = vmatprep.subr.mxu0 0.0
    %364 = vmatpush2.msra.mxu0 0.0
    %365 = vmatprep.subr.mxu0 0.0
    %366 = vmatpush2.msra.mxu0 0.0
    %367 = vmatprep.subr.mxu0 0.0
    %368 = vmatpush2.msra.mxu0 0.0
    %369 = vmatprep.subr.mxu0 0.0
    %370 = vmatpush2.msra.mxu0 0.0
    %371 = vmatprep.subr.mxu0 0.0
    %372 = vmatpush2.msra.mxu0 0.0
    %373 = vmatprep.mubr.f32.mxu0 0.0
    %374 = vmatmul.mubr.f32.gmra.mxu0 %v285
    %v375 = vpop.f32.mrf.mxu0
    %v376 = vadd.f32 %v307, %v375
    %v377 = vpop.f32.mrf.mxu0
    %378 = vdwg.mxu0
    %379 = vst [vmem:[#allocation10] sm:$0xff] %v376
    // Predicated region
    $region46: #{_mlp_forward.1} parent=1 // pred_check
      _
    $region47: #{_mlp_forward.1} parent=1 // pred_check_branch
      %381 = sbr.rel (0) target = $region49
    $region48: #{_mlp_forward.1} parent=1 // pred_region
      %s383 = ssub.s32 128, 128
      %384 = vsyncadd [#allocation4], %s383
      %s386 = sshll.u32 [#allocation10], 4
      %s387 = int_to_ptr.vmem [resolvable:$true] %s386
      %389 = dma.vmem_to_hbm [thread:$0]  %s387, 128, %s7, [#allocation4]
    $region49: #{_mlp_forward.1} parent=1 // pred_fallthru
      _
    // Predicated region
    $region50: #{_mlp_forward.1} parent=1 // pred_check
      _
    $region51: #{_mlp_forward.1} parent=1 // pred_check_branch
      %391 = sbr.rel (0) target = $region53
    $region52: #{_mlp_forward.1} parent=1 // pred_region
      %392 = dma.done [#allocation4], 128
    $region53: #{_mlp_forward.1} parent=1 // pred_fallthru
      _
    %393 = vsyncpa [#allocation3], 1
    %394 = vsyncpa [#allocation6], 1
    %395 = vsyncpa [#allocation9], 1
    %396 = vsyncpa [#allocation4], 1

</llo_original>
